<compile_context>
chip_gen: v5e
topology: v5e:2x2
jax: 0.10.0
libtpu: 0.0.40
codegen_flags: <defaults>
</compile_context>

<pallas_src>
import functools

import jax
import jax.numpy as jnp
from jax.experimental import pallas as pl
from jax.experimental.pallas import tpu as pltpu

LANE = 128


def _round_up(x, m):
    return (x + m - 1) // m * m


# ---------------------------------------------------------------------------
# Kernel: 3 matmuls + 2 tanh + store.  Dueling combine is pre-folded into w3/b3.
# ---------------------------------------------------------------------------
def dueling_dqn_kernel(x_ref, w1_ref, b1_ref, w2_ref, b2_ref, w3_ref, b3_ref,
                       out_ref):
    x = x_ref[...]                                                     # (TB, S) f32
    h = jnp.tanh(jnp.dot(x, w1_ref[...],
                         preferred_element_type=jnp.float32) + b1_ref[...])
    h = jnp.tanh(jnp.dot(h, w2_ref[...],
                         preferred_element_type=jnp.float32) + b2_ref[...])
    q = jnp.dot(h, w3_ref[...],
                preferred_element_type=jnp.float32) + b3_ref[...]      # (TB, 128)
    out_ref[...] = q.astype(out_ref.dtype)                             # lanes [0,A) = Q


# ---------------------------------------------------------------------------
# Head fusion — run ONCE per weight update, not per forward call.
# ---------------------------------------------------------------------------
def fuse_params(params):
    """Fuse the value & advantage MLP heads into one 3-matmul MLP and fold the
    dueling combine (v + adv - mean(adv)) into the last layer."""
    vw1, vb1 = params["vw1"], params["vb1"]
    aw1, ab1 = params["aw1"], params["ab1"]
    vw2, vb2 = params["vw2"], params["vb2"]
    aw2, ab2 = params["aw2"], params["ab2"]
    vw3, vb3 = params["vw3"], params["vb3"]
    aw3, ab3 = params["aw3"], params["ab3"]

    h1v, h1a = vw1.shape[1], aw1.shape[1]
    h2v, h2a = vw2.shape[1], aw2.shape[1]
    action_dim = aw3.shape[1]
    H1, H2 = h1v + h1a, h2v + h2a
    out_pad = _round_up(action_dim, LANE)          # lane-dense output slab width

    # Layer 1: simple column concat.
    w1 = jnp.concatenate([vw1, aw1], axis=1).astype(jnp.float32)       # (S, H1)
    b1 = jnp.concatenate([vb1, ab1], axis=1).astype(jnp.float32)       # (1, H1)

    # Layer 2: block-diagonal (value and advantage streams stay separate).
    w2 = jnp.zeros((H1, H2), jnp.float32)
    w2 = w2.at[:h1v, :h2v].set(vw2)
    w2 = w2.at[h1v:, h2v:].set(aw2)
    b2 = jnp.concatenate([vb2, ab2], axis=1).astype(jnp.float32)       # (1, H2)

    # Layer 3: dueling combine folded in.
    #   q_j = h_v @ vw3 + h_a @ (aw3[:, j] - mean_k aw3[:, k]) + (ab3_j - mean(ab3) + vb3)
    aw3_centered = aw3 - jnp.mean(aw3, axis=1, keepdims=True)
    w3 = jnp.zeros((H2, out_pad), jnp.float32)
    w3 = w3.at[:h2v, :action_dim].set(jnp.broadcast_to(vw3, (h2v, action_dim)))
    w3 = w3.at[h2v:, :action_dim].set(aw3_centered)
    b3 = jnp.zeros((1, out_pad), jnp.float32)
    b3 = b3.at[:, :action_dim].set(ab3 - jnp.mean(ab3, axis=1, keepdims=True) + vb3)

    fused = dict(w1=w1, b1=b1, w2=w2, b2=b2, w3=w3, b3=b3)
    return fused, action_dim


# ---------------------------------------------------------------------------
# Batch tiling policy
# ---------------------------------------------------------------------------
def _choose_batch_tiling(B, tile_b):
    """Large tiles amortize per-grid-step overhead; small batches -> grid=1.
    For multi-tile grids keep the length 2-divisible so v7x's two TensorCores
    both get work (harmless on single-TC v5e/v6e)."""
    tile_b = max(8, min(tile_b, _round_up(B, 8)))
    tile_b = _round_up(tile_b, 8)                  # f32 sublane multiple
    B_pad = _round_up(B, tile_b)
    n_tiles = B_pad // tile_b
    while n_tiles > 1 and n_tiles % 2 == 1 and tile_b > 8:
        tile_b = _round_up(tile_b // 2, 8)
        B_pad = _round_up(B, tile_b)
        n_tiles = B_pad // tile_b
    return tile_b, B_pad, n_tiles


# ---------------------------------------------------------------------------
# Forward wrapper (expects pre-fused params)
# ---------------------------------------------------------------------------
@functools.partial(jax.jit, static_argnames=("action_dim", "tile_b"))
def dueling_dqn_forward(state, fused, *, action_dim, tile_b=1024):
    """state: (B, state_dim) f32.  fused: dict from fuse_params()."""
    B, state_dim = state.shape
    w1, b1 = fused["w1"], fused["b1"]
    w2, b2 = fused["w2"], fused["b2"]
    w3, b3 = fused["w3"], fused["b3"]
    H1, H2, out_pad = w1.shape[1], w2.shape[1], w3.shape[1]

    # Cap tile_b so 2x double-buffered (x + out) tiles stay far under v5e's 16 MiB
    # default scoped-VMEM limit: 2 * tile_b * (state_dim + out_pad) * 4 B.
    tile_b, B_pad, n_tiles = _choose_batch_tiling(B, min(tile_b, 2048))
    if B_pad != B:
        state = jnp.pad(state, ((0, B_pad - B), (0, 0)))
    grid = (n_tiles,)

    flops = 2 * B_pad * (state_dim * H1 + H1 * H2 + H2 * out_pad)
    transcendentals = B_pad * (H1 + H2)
    bytes_accessed = 4 * (B_pad * state_dim + B_pad * out_pad
                          + state_dim * H1 + H1 * H2 + H2 * out_pad
                          + H1 + H2 + out_pad)

    slab = pl.pallas_call(
        dueling_dqn_kernel,
        out_shape=jax.ShapeDtypeStruct((B_pad, out_pad), jnp.float32),
        grid=grid,
        in_specs=[
            pl.BlockSpec((tile_b, state_dim), lambda i: (i, 0)),   # x: tiled over batch
            pl.BlockSpec((state_dim, H1), lambda i: (0, 0)),       # weights: resident
            pl.BlockSpec((1, H1), lambda i: (0, 0)),
            pl.BlockSpec((H1, H2), lambda i: (0, 0)),
            pl.BlockSpec((1, H2), lambda i: (0, 0)),
            pl.BlockSpec((H2, out_pad), lambda i: (0, 0)),
            pl.BlockSpec((1, out_pad), lambda i: (0, 0)),
        ],
        out_specs=pl.BlockSpec((tile_b, out_pad), lambda i: (i, 0)),
        compiler_params=pltpu.CompilerParams(
            dimension_semantics=("parallel",)),
        cost_estimate=pl.CostEstimate(
            flops=flops,
            transcendentals=transcendentals,
            bytes_accessed=bytes_accessed),
    )(state, w1, b1, w2, b2, w3, b3)

    values = slab[:B, :action_dim]
    actions = jnp.argmax(values, axis=-1)      # tiny op on the lane-dense slab slice
    return actions, values


# ---------------------------------------------------------------------------
# Params + pure-JAX reference
# ---------------------------------------------------------------------------
def init_params(key, state_dim, action_dim, hidden_sizes=(64, 64)):
    """Deterministic synthetic parameters; weights stored as (in, out)."""
    sizes_v = [state_dim, *hidden_sizes, 1]
    sizes_a = [state_dim, *hidden_sizes, action_dim]
    params = {}
    keys = jax.random.split(key, 2 * (len(hidden_sizes) + 1))
    ki = 0
    for prefix, sizes in (("v", sizes_v), ("a", sizes_a)):
        for j in range(len(sizes) - 1):
            fan_in, fan_out = sizes[j], sizes[j + 1]
            w = jax.random.normal(keys[ki], (fan_in, fan_out), jnp.float32)
            w = w * (1.0 / jnp.sqrt(jnp.float32(fan_in)))
            b = jnp.full((1, fan_out), 0.01 * (j + 1), jnp.float32)
            params[f"{prefix}w{j + 1}"] = w
            params[f"{prefix}b{j + 1}"] = b
            ki += 1
    return params


def reference_forward(state, params):
    """Pure-JAX reference matching the PyTorch DuelingDQN semantics."""
    def mlp3(x, p, pre):
        h = jnp.tanh(x @ p[f"{pre}w1"] + p[f"{pre}b1"])
        h = jnp.tanh(h @ p[f"{pre}w2"] + p[f"{pre}b2"])
        return h @ p[f"{pre}w3"] + p[f"{pre}b3"]
    adv = mlp3(state, params, "a")
    val = mlp3(state, params, "v")
    values = val + adv - adv.mean(axis=-1, keepdims=True)
    actions = jnp.argmax(values, axis=-1)
    return actions, values


if __name__ == "__main__":
    key = jax.random.PRNGKey(0)
    k_params, k_state = jax.random.split(key)

    batch, state_dim, action_dim = 256, 32, 8
    params = init_params(k_params, state_dim, action_dim, hidden_sizes=(64, 64))
    state = jax.random.normal(k_state, (batch, state_dim), jnp.float32)

    # Head fusion runs once per weight update (hoisted off the forward hot path).
    fused, act_dim = fuse_params(params)
    fused = jax.tree_util.tree_map(jax.block_until_ready, fused)

    actions, values = dueling_dqn_forward(state, fused, action_dim=act_dim)
    jax.block_until_ready((actions, values))

    ref_actions, ref_values = reference_forward(state, params)
    assert jnp.allclose(values, ref_values, atol=1e-4, rtol=1e-4)
    assert jnp.array_equal(actions, ref_actions)

    print("KERNEL_OK")
</pallas_src>

<mosaic_0001>
module attributes {stable_mosaic.version = 11 : i64} {
  func.func @dueling_dqn_kernel(%arg0: i32, %arg1: memref<256x32xf32, #tpu.memory_space<vmem>>, %arg2: memref<32x128xf32, #tpu.memory_space<vmem>>, %arg3: memref<1x128xf32, #tpu.memory_space<vmem>>, %arg4: memref<128x128xf32, #tpu.memory_space<vmem>>, %arg5: memref<1x128xf32, #tpu.memory_space<vmem>>, %arg6: memref<128x128xf32, #tpu.memory_space<vmem>>, %arg7: memref<1x128xf32, #tpu.memory_space<vmem>>, %arg8: memref<256x128xf32, #tpu.memory_space<vmem>>) attributes {dimension_semantics = [#tpu.dimension_semantics<parallel>], iteration_bounds = array<i64: 1>, scalar_prefetch = 0 : i64, scratch_operands = 0 : i64, tpu.core_type = #tpu.core_type<tc>, window_params = [{transform_indices = @transform_0, window_bounds = array<i64: 256, 32>}, {pipeline_mode = #tpu.pipeline_mode<synchronous>, transform_indices = @transform_1, window_bounds = array<i64: 32, 128>}, {pipeline_mode = #tpu.pipeline_mode<synchronous>, transform_indices = @transform_2, window_bounds = array<i64: 1, 128>}, {pipeline_mode = #tpu.pipeline_mode<synchronous>, transform_indices = @transform_3, window_bounds = array<i64: 128, 128>}, {pipeline_mode = #tpu.pipeline_mode<synchronous>, transform_indices = @transform_4, window_bounds = array<i64: 1, 128>}, {pipeline_mode = #tpu.pipeline_mode<synchronous>, transform_indices = @transform_5, window_bounds = array<i64: 128, 128>}, {pipeline_mode = #tpu.pipeline_mode<synchronous>, transform_indices = @transform_6, window_bounds = array<i64: 1, 128>}, {transform_indices = @transform_7, window_bounds = array<i64: 256, 128>}]} {
    %c0 = arith.constant 0 : index
    %c0_0 = arith.constant 0 : index
    %0 = vector.load %arg1[%c0, %c0_0] : memref<256x32xf32, #tpu.memory_space<vmem>>, vector<256x32xf32>
    %c0_1 = arith.constant 0 : index
    %c0_2 = arith.constant 0 : index
    %1 = vector.load %arg2[%c0_1, %c0_2] : memref<32x128xf32, #tpu.memory_space<vmem>>, vector<32x128xf32>
    %cst = arith.constant dense<0.000000e+00> : vector<256x128xf32>
    %2 = tpu.matmul %0, %1, %cst {dimension_numbers = #tpu.dot_dimension_numbers<[1], [0], [0], [1], [0, 0, 1, 1], [], []>} : vector<256x32xf32>, vector<32x128xf32>, vector<256x128xf32> -> vector<256x128xf32>
    %c0_3 = arith.constant 0 : index
    %c0_4 = arith.constant 0 : index
    %3 = vector.load %arg3[%c0_3, %c0_4] : memref<1x128xf32, #tpu.memory_space<vmem>>, vector<1x128xf32>
    %4 = vector.broadcast %3 : vector<1x128xf32> to vector<256x128xf32>
    %5 = arith.addf %2, %4 : vector<256x128xf32>
    %6 = math.tanh %5 : vector<256x128xf32>
    %c0_5 = arith.constant 0 : index
    %c0_6 = arith.constant 0 : index
    %7 = vector.load %arg4[%c0_5, %c0_6] : memref<128x128xf32, #tpu.memory_space<vmem>>, vector<128x128xf32>
    %cst_7 = arith.constant dense<0.000000e+00> : vector<256x128xf32>
    %8 = tpu.matmul %6, %7, %cst_7 {dimension_numbers = #tpu.dot_dimension_numbers<[1], [0], [0], [1], [0, 0, 1, 1], [], []>} : vector<256x128xf32>, vector<128x128xf32>, vector<256x128xf32> -> vector<256x128xf32>
    %c0_8 = arith.constant 0 : index
    %c0_9 = arith.constant 0 : index
    %9 = vector.load %arg5[%c0_8, %c0_9] : memref<1x128xf32, #tpu.memory_space<vmem>>, vector<1x128xf32>
    %10 = vector.broadcast %9 : vector<1x128xf32> to vector<256x128xf32>
    %11 = arith.addf %8, %10 : vector<256x128xf32>
    %12 = math.tanh %11 : vector<256x128xf32>
    %c0_10 = arith.constant 0 : index
    %c0_11 = arith.constant 0 : index
    %13 = vector.load %arg6[%c0_10, %c0_11] : memref<128x128xf32, #tpu.memory_space<vmem>>, vector<128x128xf32>
    %cst_12 = arith.constant dense<0.000000e+00> : vector<256x128xf32>
    %14 = tpu.matmul %12, %13, %cst_12 {dimension_numbers = #tpu.dot_dimension_numbers<[1], [0], [0], [1], [0, 0, 1, 1], [], []>} : vector<256x128xf32>, vector<128x128xf32>, vector<256x128xf32> -> vector<256x128xf32>
    %c0_13 = arith.constant 0 : index
    %c0_14 = arith.constant 0 : index
    %15 = vector.load %arg7[%c0_13, %c0_14] : memref<1x128xf32, #tpu.memory_space<vmem>>, vector<1x128xf32>
    %16 = vector.broadcast %15 : vector<1x128xf32> to vector<256x128xf32>
    %17 = arith.addf %14, %16 : vector<256x128xf32>
    %c0_15 = arith.constant 0 : index
    %c0_16 = arith.constant 0 : index
    %18 = vector.load %arg8[%c0_15, %c0_16] : memref<256x128xf32, #tpu.memory_space<vmem>>, vector<256x128xf32>
    tpu.vector_store %arg8[%c0_15, %c0_16], %17 {strides = array<i32>} : memref<256x128xf32, #tpu.memory_space<vmem>>, vector<256x128xf32>,
    return
  }
  func.func @transform_0(%arg0: i32) -> (i32, i32) {
    %c0_i32 = arith.constant 0 : i32
    %c0_i32_0 = arith.constant 0 : i32
    return %arg0, %c0_i32 : i32, i32
  }
  func.func @transform_1(%arg0: i32) -> (i32, i32) {
    %c0_i32 = arith.constant 0 : i32
    %c0_i32_0 = arith.constant 0 : i32
    %c0_i32_1 = arith.constant 0 : i32
    return %c0_i32, %c0_i32_0 : i32, i32
  }
  func.func @transform_2(%arg0: i32) -> (i32, i32) {
    %c0_i32 = arith.constant 0 : i32
    %c0_i32_0 = arith.constant 0 : i32
    %c0_i32_1 = arith.constant 0 : i32
    return %c0_i32, %c0_i32_0 : i32, i32
  }
  func.func @transform_3(%arg0: i32) -> (i32, i32) {
    %c0_i32 = arith.constant 0 : i32
    %c0_i32_0 = arith.constant 0 : i32
    %c0_i32_1 = arith.constant 0 : i32
    return %c0_i32, %c0_i32_0 : i32, i32
  }
  func.func @transform_4(%arg0: i32) -> (i32, i32) {
    %c0_i32 = arith.constant 0 : i32
    %c0_i32_0 = arith.constant 0 : i32
    %c0_i32_1 = arith.constant 0 : i32
    return %c0_i32, %c0_i32_0 : i32, i32
  }
  func.func @transform_5(%arg0: i32) -> (i32, i32) {
    %c0_i32 = arith.constant 0 : i32
    %c0_i32_0 = arith.constant 0 : i32
    %c0_i32_1 = arith.constant 0 : i32
    return %c0_i32, %c0_i32_0 : i32, i32
  }
  func.func @transform_6(%arg0: i32) -> (i32, i32) {
    %c0_i32 = arith.constant 0 : i32
    %c0_i32_0 = arith.constant 0 : i32
    %c0_i32_1 = arith.constant 0 : i32
    return %c0_i32, %c0_i32_0 : i32, i32
  }
  func.func @transform_7(%arg0: i32) -> (i32, i32) {
    %c0_i32 = arith.constant 0 : i32
    %c0_i32_0 = arith.constant 0 : i32
    return %arg0, %c0_i32 : i32, i32
  }
}

</mosaic_0001>

<llo_original>
// kernel: dueling_dqn_forward.1
$region0: #{dueling_dqn_forward.1}
  #allocation0 [shape = 'u32[]', space=smem, size = 0x4, offset = 0x4, fixed_abs, tag = 'smem constant byte address 0x4 - core index']
  #allocation1 [shape = 'u32[72,128]{1,0:T(1,128)}', space=vmem, size = 0x9000, scoped, tag = 'internal scratch']
  %s0 = inlined_call_operand.vmem [shape: f32[256,32], index: 0, kind: input, shape index: {}]
  %s1 = inlined_call_operand.vmem [shape: f32[32,128], index: 1, kind: input, shape index: {}]
  %s2 = inlined_call_operand.vmem [shape: f32[1,128], index: 2, kind: input, shape index: {}]
  %s3 = inlined_call_operand.vmem [shape: f32[128,128], index: 3, kind: input, shape index: {}]
  %s4 = inlined_call_operand.vmem [shape: f32[1,128], index: 4, kind: input, shape index: {}]
  %s5 = inlined_call_operand.vmem [shape: f32[128,128], index: 5, kind: input, shape index: {}]
  %s6 = inlined_call_operand.vmem [shape: f32[1,128], index: 6, kind: input, shape index: {}]
  %s7 = inlined_call_operand.vmem [shape: f32[256,128], index: 7, kind: output, shape index: {}]
  %s8 = sld [smem:[#allocation0]]
  $region38: #{dueling_dqn_forward.1} parent=0
    _
  %s10 = ssub.s32 1, %s8
  %s11 = scalar_select 0, %s10, %s8
  // Predicated region
  $region2: #{dueling_dqn_forward.1} parent=0 // pred_check
    _
  $region3: #{dueling_dqn_forward.1} parent=0 // pred_check_branch
    %13 = sbr.rel (0) target = $region5
  $region4: #{dueling_dqn_forward.1} parent=0 // pred_region
    _
  $region5: #{dueling_dqn_forward.1} parent=0 // pred_fallthru
    _
  // Predicated region
  $region6: #{dueling_dqn_forward.1} parent=0 // pred_check
    _
  $region7: #{dueling_dqn_forward.1} parent=0 // pred_check_branch
    %15 = sbr.rel (0) target = $region9
  $region8: #{dueling_dqn_forward.1} parent=0 // pred_region
    _
  $region9: #{dueling_dqn_forward.1} parent=0 // pred_fallthru
    _
  // Predicated region
  $region10: #{dueling_dqn_forward.1} parent=0 // pred_check
    _
  $region11: #{dueling_dqn_forward.1} parent=0 // pred_check_branch
    %17 = sbr.rel (0) target = $region13
  $region12: #{dueling_dqn_forward.1} parent=0 // pred_region
    _
  $region13: #{dueling_dqn_forward.1} parent=0 // pred_fallthru
    _
  // Predicated region
  $region14: #{dueling_dqn_forward.1} parent=0 // pred_check
    _
  $region15: #{dueling_dqn_forward.1} parent=0 // pred_check_branch
    %19 = sbr.rel (0) target = $region17
  $region16: #{dueling_dqn_forward.1} parent=0 // pred_region
    _
  $region17: #{dueling_dqn_forward.1} parent=0 // pred_fallthru
    _
  // Predicated region
  $region18: #{dueling_dqn_forward.1} parent=0 // pred_check
    _
  $region19: #{dueling_dqn_forward.1} parent=0 // pred_check_branch
    %21 = sbr.rel (0) target = $region21
  $region20: #{dueling_dqn_forward.1} parent=0 // pred_region
    _
  $region21: #{dueling_dqn_forward.1} parent=0 // pred_fallthru
    _
  // Predicated region
  $region22: #{dueling_dqn_forward.1} parent=0 // pred_check
    _
  $region23: #{dueling_dqn_forward.1} parent=0 // pred_check_branch
    %23 = sbr.rel (0) target = $region25
  $region24: #{dueling_dqn_forward.1} parent=0 // pred_region
    _
  $region25: #{dueling_dqn_forward.1} parent=0 // pred_fallthru
    _
  // Predicated region
  $region26: #{dueling_dqn_forward.1} parent=0 // pred_check
    _
  $region27: #{dueling_dqn_forward.1} parent=0 // pred_check_branch
    %25 = sbr.rel (0) target = $region29
  $region28: #{dueling_dqn_forward.1} parent=0 // pred_region
    _
  $region29: #{dueling_dqn_forward.1} parent=0 // pred_fallthru
    _
  %v26 = vld [vmem:[%s0] sm:$0xff]
  %v27 = vld [vmem:[%s0 + $0x8] sm:$0xff]
  %v28 = vld [vmem:[%s0 + $0x10] sm:$0xff]
  %v29 = vld [vmem:[%s0 + $0x18] sm:$0xff]
  %v30 = vld [vmem:[%s0 + $0x20] sm:$0xff]
  %v31 = vld [vmem:[%s0 + $0x28] sm:$0xff]
  %v32 = vld [vmem:[%s0 + $0x30] sm:$0xff]
  %v33 = vld [vmem:[%s0 + $0x38] sm:$0xff]
  %v34 = vld [vmem:[%s0 + $0x40] sm:$0xff]
  %v35 = vld [vmem:[%s0 + $0x48] sm:$0xff]
  %v36 = vld [vmem:[%s0 + $0x50] sm:$0xff]
  %v37 = vld [vmem:[%s0 + $0x58] sm:$0xff]
  %v38 = vld [vmem:[%s0 + $0x60] sm:$0xff]
  %v39 = vld [vmem:[%s0 + $0x68] sm:$0xff]
  %v40 = vld [vmem:[%s0 + $0x70] sm:$0xff]
  %v41 = vld [vmem:[%s0 + $0x78] sm:$0xff]
  %v42 = vld [vmem:[%s0 + $0x80] sm:$0xff]
  %v43 = vld [vmem:[%s0 + $0x88] sm:$0xff]
  %v44 = vld [vmem:[%s0 + $0x90] sm:$0xff]
  %v45 = vld [vmem:[%s0 + $0x98] sm:$0xff]
  %v46 = vld [vmem:[%s0 + $0xa0] sm:$0xff]
  %v47 = vld [vmem:[%s0 + $0xa8] sm:$0xff]
  %v48 = vld [vmem:[%s0 + $0xb0] sm:$0xff]
  %v49 = vld [vmem:[%s0 + $0xb8] sm:$0xff]
  %v50 = vld [vmem:[%s0 + $0xc0] sm:$0xff]
  %v51 = vld [vmem:[%s0 + $0xc8] sm:$0xff]
  %v52 = vld [vmem:[%s0 + $0xd0] sm:$0xff]
  %v53 = vld [vmem:[%s0 + $0xd8] sm:$0xff]
  %v54 = vld [vmem:[%s0 + $0xe0] sm:$0xff]
  %v55 = vld [vmem:[%s0 + $0xe8] sm:$0xff]
  %v56 = vld [vmem:[%s0 + $0xf0] sm:$0xff]
  %v57 = vld [vmem:[%s0 + $0xf8] sm:$0xff]
  %v58 = vld [vmem:[%s1] sm:$0xff]
  %v59 = vld [vmem:[%s1 + $0x8] sm:$0xff]
  %v60 = vld [vmem:[%s1 + $0x10] sm:$0xff]
  %v61 = vld [vmem:[%s1 + $0x18] sm:$0xff]
  %v62 = vld [vmem:[%s2] sm:$0x1]
  %v64 = vperm.slane %v62, 0
  %vm66 = vcmask 261120
  %v68 = vsel %vm66, %v26, 0
  %v71 = vsel %vm66, %v27, 0
  %v74 = vsel %vm66, %v28, 0
  %v77 = vsel %vm66, %v29, 0
  %v80 = vsel %vm66, %v30, 0
  %v83 = vsel %vm66, %v31, 0
  %v86 = vsel %vm66, %v32, 0
  %v89 = vsel %vm66, %v33, 0
  %v92 = vsel %vm66, %v34, 0
  %v95 = vsel %vm66, %v35, 0
  %v98 = vsel %vm66, %v36, 0
  %v101 = vsel %vm66, %v37, 0
  %v104 = vsel %vm66, %v38, 0
  %v107 = vsel %vm66, %v39, 0
  %v110 = vsel %vm66, %v40, 0
  %v113 = vsel %vm66, %v41, 0
  %v116 = vsel %vm66, %v42, 0
  %v119 = vsel %vm66, %v43, 0
  %v122 = vsel %vm66, %v44, 0
  %v125 = vsel %vm66, %v45, 0
  %v128 = vsel %vm66, %v46, 0
  %v131 = vsel %vm66, %v47, 0
  %v134 = vsel %vm66, %v48, 0
  %v137 = vsel %vm66, %v49, 0
  %v140 = vsel %vm66, %v50, 0
  %v143 = vsel %vm66, %v51, 0
  %v146 = vsel %vm66, %v52, 0
  %v149 = vsel %vm66, %v53, 0
  %v152 = vsel %vm66, %v54, 0
  %v155 = vsel %vm66, %v55, 0
  %v158 = vsel %vm66, %v56, 0
  %v161 = vsel %vm66, %v57, 0
  %163 = vmatpush.msra.mxu0 0.0
  %164 = vmatpush.msra.mxu0 0.0
  %165 = vmatpush.msra.mxu0 0.0
  %166 = vmatpush.msra.mxu0 0.0
  %167 = vmatpush.msra.mxu0 0.0
  %168 = vmatpush.msra.mxu0 0.0
  %169 = vmatpush.msra.mxu0 0.0
  %170 = vmatpush.msra.mxu0 0.0
  %171 = vmatpush.msra.mxu0 0.0
  %172 = vmatpush.msra.mxu0 0.0
  %173 = vmatpush.msra.mxu0 0.0
  %174 = vmatpush.msra.mxu0 0.0
  %175 = vmatpush.msra.mxu0 %v61
  %176 = vmatpush.msra.mxu0 %v60
  %177 = vmatpush.msra.mxu0 %v59
  %178 = vmatpush.msra.mxu0 %v58
  %179 = vmatmul.f32.gmra.mxu0 %v68
  %v180 = vpop.f32.mrf.mxu0
  %v181 = vadd.f32 %v64, %v180
  %182 = vmatmul.f32.gmra.mxu0 %v71
  %v183 = vpop.f32.mrf.mxu0
  %v184 = vadd.f32 %v64, %v183
  %185 = vmatmul.f32.gmra.mxu0 %v74
  %v186 = vpop.f32.mrf.mxu0
  %v187 = vadd.f32 %v64, %v186
  %188 = vmatmul.f32.gmra.mxu0 %v77
  %v189 = vpop.f32.mrf.mxu0
  %v190 = vadd.f32 %v64, %v189
  %191 = vmatmul.f32.gmra.mxu0 %v80
  %v192 = vpop.f32.mrf.mxu0
  %v193 = vadd.f32 %v64, %v192
  %194 = vmatmul.f32.gmra.mxu0 %v83
  %v195 = vpop.f32.mrf.mxu0
  %v196 = vadd.f32 %v64, %v195
  %197 = vmatmul.f32.gmra.mxu0 %v86
  %v198 = vpop.f32.mrf.mxu0
  %v199 = vadd.f32 %v64, %v198
  %200 = vmatmul.f32.gmra.mxu0 %v89
  %v201 = vpop.f32.mrf.mxu0
  %v202 = vadd.f32 %v64, %v201
  %203 = vmatmul.f32.gmra.mxu0 %v92
  %v204 = vpop.f32.mrf.mxu0
  %v205 = vadd.f32 %v64, %v204
  %206 = vmatmul.f32.gmra.mxu0 %v95
  %v207 = vpop.f32.mrf.mxu0
  %v208 = vadd.f32 %v64, %v207
  %209 = vmatmul.f32.gmra.mxu0 %v98
  %v210 = vpop.f32.mrf.mxu0
  %v211 = vadd.f32 %v64, %v210
  %212 = vmatmul.f32.gmra.mxu0 %v101
  %v213 = vpop.f32.mrf.mxu0
  %v214 = vadd.f32 %v64, %v213
  %215 = vmatmul.f32.gmra.mxu0 %v104
  %v216 = vpop.f32.mrf.mxu0
  %v217 = vadd.f32 %v64, %v216
  %218 = vmatmul.f32.gmra.mxu0 %v107
  %v219 = vpop.f32.mrf.mxu0
  %v220 = vadd.f32 %v64, %v219
  %221 = vmatmul.f32.gmra.mxu0 %v110
  %v222 = vpop.f32.mrf.mxu0
  %v223 = vadd.f32 %v64, %v222
  %224 = vmatmul.f32.gmra.mxu0 %v113
  %v225 = vpop.f32.mrf.mxu0
  %v226 = vadd.f32 %v64, %v225
  %227 = vmatmul.f32.gmra.mxu0 %v116
  %v228 = vpop.f32.mrf.mxu0
  %v229 = vadd.f32 %v64, %v228
  %230 = vmatmul.f32.gmra.mxu0 %v119
  %v231 = vpop.f32.mrf.mxu0
  %v232 = vadd.f32 %v64, %v231
  %233 = vmatmul.f32.gmra.mxu0 %v122
  %v234 = vpop.f32.mrf.mxu0
  %v235 = vadd.f32 %v64, %v234
  %236 = vmatmul.f32.gmra.mxu0 %v125
  %v237 = vpop.f32.mrf.mxu0
  %v238 = vadd.f32 %v64, %v237
  %239 = vmatmul.f32.gmra.mxu0 %v128
  %v240 = vpop.f32.mrf.mxu0
  %v241 = vadd.f32 %v64, %v240
  %242 = vmatmul.f32.gmra.mxu0 %v131
  %v243 = vpop.f32.mrf.mxu0
  %v244 = vadd.f32 %v64, %v243
  %245 = vmatmul.f32.gmra.mxu0 %v134
  %v246 = vpop.f32.mrf.mxu0
  %v247 = vadd.f32 %v64, %v246
  %248 = vmatmul.f32.gmra.mxu0 %v137
  %v249 = vpop.f32.mrf.mxu0
  %v250 = vadd.f32 %v64, %v249
  %251 = vmatmul.f32.gmra.mxu0 %v140
  %v252 = vpop.f32.mrf.mxu0
  %v253 = vadd.f32 %v64, %v252
  %254 = vmatmul.f32.gmra.mxu0 %v143
  %v255 = vpop.f32.mrf.mxu0
  %v256 = vadd.f32 %v64, %v255
  %257 = vmatmul.f32.gmra.mxu0 %v146
  %v258 = vpop.f32.mrf.mxu0
  %v259 = vadd.f32 %v64, %v258
  %260 = vmatmul.f32.gmra.mxu0 %v149
  %v261 = vpop.f32.mrf.mxu0
  %v262 = vadd.f32 %v64, %v261
  %263 = vmatmul.f32.gmra.mxu0 %v152
  %v264 = vpop.f32.mrf.mxu0
  %v265 = vadd.f32 %v64, %v264
  %266 = vmatmul.f32.gmra.mxu0 %v155
  %v267 = vpop.f32.mrf.mxu0
  %v268 = vadd.f32 %v64, %v267
  %269 = vmatmul.f32.gmra.mxu0 %v158
  %v270 = vpop.f32.mrf.mxu0
  %v271 = vadd.f32 %v64, %v270
  %272 = vmatmul.f32.gmra.mxu0 %v161
  %v273 = vpop.f32.mrf.mxu0
  %v274 = vadd.f32 %v64, %v273
  %275 = vdwg.mxu0
  %v276 = vtanh.pop %v181
  %v277 = vtanh.pop %v184
  %v278 = vtanh.pop %v187
  %v279 = vtanh.pop %v190
  %v280 = vtanh.pop %v193
  %v281 = vtanh.pop %v196
  %v282 = vtanh.pop %v199
  %v283 = vtanh.pop %v202
  %v284 = vtanh.pop %v205
  %v285 = vtanh.pop %v208
  %v286 = vtanh.pop %v211
  %v287 = vtanh.pop %v214
  %v288 = vtanh.pop %v217
  %v289 = vtanh.pop %v220
  %v290 = vtanh.pop %v223
  %v291 = vtanh.pop %v226
  %v292 = vtanh.pop %v229
  %v293 = vtanh.pop %v232
  %v294 = vtanh.pop %v235
  %v295 = vtanh.pop %v238
  %v296 = vtanh.pop %v241
  %v297 = vtanh.pop %v244
  %v298 = vtanh.pop %v247
  %v299 = vtanh.pop %v250
  %v300 = vtanh.pop %v253
  %v301 = vtanh.pop %v256
  %v302 = vtanh.pop %v259
  %v303 = vtanh.pop %v262
  %v304 = vtanh.pop %v265
  %v305 = vtanh.pop %v268
  %v306 = vtanh.pop %v271
  %v307 = vtanh.pop %v274
  %v308 = vld [vmem:[%s3] sm:$0xff]
  %v309 = vld [vmem:[%s3 + $0x8] sm:$0xff]
  %v310 = vld [vmem:[%s3 + $0x10] sm:$0xff]
  %v311 = vld [vmem:[%s3 + $0x18] sm:$0xff]
  %v312 = vld [vmem:[%s3 + $0x20] sm:$0xff]
  %v313 = vld [vmem:[%s3 + $0x28] sm:$0xff]
  %v314 = vld [vmem:[%s3 + $0x30] sm:$0xff]
  %v315 = vld [vmem:[%s3 + $0x38] sm:$0xff]
  %v316 = vld [vmem:[%s3 + $0x40] sm:$0xff]
  %v317 = vld [vmem:[%s3 + $0x48] sm:$0xff]
  %v318 = vld [vmem:[%s3 + $0x50] sm:$0xff]
  %v319 = vld [vmem:[%s3 + $0x58] sm:$0xff]
  %v320 = vld [vmem:[%s3 + $0x60] sm:$0xff]
  %v321 = vld [vmem:[%s3 + $0x68] sm:$0xff]
  %v322 = vld [vmem:[%s3 + $0x70] sm:$0xff]
  %v323 = vld [vmem:[%s3 + $0x78] sm:$0xff]
  %v324 = vld [vmem:[%s4] sm:$0x1]
  %v326 = vperm.slane %v324, 0
  %328 = vmatpush.msra.mxu0 %v323
  %329 = vmatpush.msra.mxu0 %v322
  %330 = vmatpush.msra.mxu0 %v321
  %331 = vmatpush.msra.mxu0 %v320
  %332 = vmatpush.msra.mxu0 %v319
  %333 = vmatpush.msra.mxu0 %v318
  %334 = vmatpush.msra.mxu0 %v317
  %335 = vmatpush.msra.mxu0 %v316
  %336 = vmatpush.msra.mxu0 %v315
  %337 = vmatpush.msra.mxu0 %v314
  %338 = vmatpush.msra.mxu0 %v313
  %339 = vmatpush.msra.mxu0 %v312
  %340 = vmatpush.msra.mxu0 %v311
  %341 = vmatpush.msra.mxu0 %v310
  %342 = vmatpush.msra.mxu0 %v309
  %343 = vmatpush.msra.mxu0 %v308
  %344 = vmatmul.f32.gmra.mxu0 %v276
  %v345 = vpop.f32.mrf.mxu0
  %v346 = vadd.f32 %v326, %v345
  %347 = vmatmul.f32.gmra.mxu0 %v277
  %v348 = vpop.f32.mrf.mxu0
  %v349 = vadd.f32 %v326, %v348
  %350 = vmatmul.f32.gmra.mxu0 %v278
  %v351 = vpop.f32.mrf.mxu0
  %v352 = vadd.f32 %v326, %v351
  %353 = vmatmul.f32.gmra.mxu0 %v279
  %v354 = vpop.f32.mrf.mxu0
  %v355 = vadd.f32 %v326, %v354
  %356 = vmatmul.f32.gmra.mxu0 %v280
  %v357 = vpop.f32.mrf.mxu0
  %v358 = vadd.f32 %v326, %v357
  %359 = vmatmul.f32.gmra.mxu0 %v281
  %v360 = vpop.f32.mrf.mxu0
  %v361 = vadd.f32 %v326, %v360
  %362 = vmatmul.f32.gmra.mxu0 %v282
  %v363 = vpop.f32.mrf.mxu0
  %v364 = vadd.f32 %v326, %v363
  %365 = vmatmul.f32.gmra.mxu0 %v283
  %v366 = vpop.f32.mrf.mxu0
  %v367 = vadd.f32 %v326, %v366
  %368 = vmatmul.f32.gmra.mxu0 %v284
  %v369 = vpop.f32.mrf.mxu0
  %v370 = vadd.f32 %v326, %v369
  %371 = vmatmul.f32.gmra.mxu0 %v285
  %v372 = vpop.f32.mrf.mxu0
  %v373 = vadd.f32 %v326, %v372
  %374 = vmatmul.f32.gmra.mxu0 %v286
  %v375 = vpop.f32.mrf.mxu0
  %v376 = vadd.f32 %v326, %v375
  %377 = vmatmul.f32.gmra.mxu0 %v287
  %v378 = vpop.f32.mrf.mxu0
  %v379 = vadd.f32 %v326, %v378
  %380 = vmatmul.f32.gmra.mxu0 %v288
  %v381 = vpop.f32.mrf.mxu0
  %v382 = vadd.f32 %v326, %v381
  %383 = vmatmul.f32.gmra.mxu0 %v289
  %v384 = vpop.f32.mrf.mxu0
  %v385 = vadd.f32 %v326, %v384
  %386 = vmatmul.f32.gmra.mxu0 %v290
  %v387 = vpop.f32.mrf.mxu0
  %v388 = vadd.f32 %v326, %v387
  %389 = vmatmul.f32.gmra.mxu0 %v291
  %v390 = vpop.f32.mrf.mxu0
  %v391 = vadd.f32 %v326, %v390
  %392 = vmatmul.f32.gmra.mxu0 %v292
  %v393 = vpop.f32.mrf.mxu0
  %v394 = vadd.f32 %v326, %v393
  %395 = vmatmul.f32.gmra.mxu0 %v293
  %v396 = vpop.f32.mrf.mxu0
  %v397 = vadd.f32 %v326, %v396
  %398 = vmatmul.f32.gmra.mxu0 %v294
  %v399 = vpop.f32.mrf.mxu0
  %v400 = vadd.f32 %v326, %v399
  %401 = vmatmul.f32.gmra.mxu0 %v295
  %v402 = vpop.f32.mrf.mxu0
  %v403 = vadd.f32 %v326, %v402
  %404 = vmatmul.f32.gmra.mxu0 %v296
  %v405 = vpop.f32.mrf.mxu0
  %v406 = vadd.f32 %v326, %v405
  %407 = vmatmul.f32.gmra.mxu0 %v297
  %v408 = vpop.f32.mrf.mxu0
  %v409 = vadd.f32 %v326, %v408
  %410 = vmatmul.f32.gmra.mxu0 %v298
  %v411 = vpop.f32.mrf.mxu0
  %v412 = vadd.f32 %v326, %v411
  %413 = vmatmul.f32.gmra.mxu0 %v299
  %v414 = vpop.f32.mrf.mxu0
  %v415 = vadd.f32 %v326, %v414
  %416 = vmatmul.f32.gmra.mxu0 %v300
  %v417 = vpop.f32.mrf.mxu0
  %v418 = vadd.f32 %v326, %v417
  %419 = vmatmul.f32.gmra.mxu0 %v301
  %v420 = vpop.f32.mrf.mxu0
  %v421 = vadd.f32 %v326, %v420
  %422 = vmatmul.f32.gmra.mxu0 %v302
  %v423 = vpop.f32.mrf.mxu0
  %v424 = vadd.f32 %v326, %v423
  %425 = vmatmul.f32.gmra.mxu0 %v303
  %v426 = vpop.f32.mrf.mxu0
  %v427 = vadd.f32 %v326, %v426
  %428 = vmatmul.f32.gmra.mxu0 %v304
  %v429 = vpop.f32.mrf.mxu0
  %v430 = vadd.f32 %v326, %v429
  %431 = vmatmul.f32.gmra.mxu0 %v305
  %v432 = vpop.f32.mrf.mxu0
  %v433 = vadd.f32 %v326, %v432
  %434 = vmatmul.f32.gmra.mxu0 %v306
  %v435 = vpop.f32.mrf.mxu0
  %v436 = vadd.f32 %v326, %v435
  %437 = vmatmul.f32.gmra.mxu0 %v307
  %v438 = vpop.f32.mrf.mxu0
  %v439 = vadd.f32 %v326, %v438
  %440 = vdwg.mxu0
  %v441 = vtanh.pop %v346
  %v442 = vtanh.pop %v349
  %v443 = vtanh.pop %v352
  %v444 = vtanh.pop %v355
  %v445 = vtanh.pop %v358
  %v446 = vtanh.pop %v361
  %v447 = vtanh.pop %v364
  %v448 = vtanh.pop %v367
  %v449 = vtanh.pop %v370
  %v450 = vtanh.pop %v373
  %v451 = vtanh.pop %v376
  %v452 = vtanh.pop %v379
  %v453 = vtanh.pop %v382
  %v454 = vtanh.pop %v385
  %v455 = vtanh.pop %v388
  %v456 = vtanh.pop %v391
  %v457 = vtanh.pop %v394
  %v458 = vtanh.pop %v397
  %v459 = vtanh.pop %v400
  %v460 = vtanh.pop %v403
  %v461 = vtanh.pop %v406
  %v462 = vtanh.pop %v409
  %v463 = vtanh.pop %v412
  %v464 = vtanh.pop %v415
  %v465 = vtanh.pop %v418
  %v466 = vtanh.pop %v421
  %v467 = vtanh.pop %v424
  %v468 = vtanh.pop %v427
  %v469 = vtanh.pop %v430
  %v470 = vtanh.pop %v433
  %v471 = vtanh.pop %v436
  %v472 = vtanh.pop %v439
  %v473 = vld [vmem:[%s5] sm:$0xff]
  %v474 = vld [vmem:[%s5 + $0x8] sm:$0xff]
  %v475 = vld [vmem:[%s5 + $0x10] sm:$0xff]
  %v476 = vld [vmem:[%s5 + $0x18] sm:$0xff]
  %v477 = vld [vmem:[%s5 + $0x20] sm:$0xff]
  %v478 = vld [vmem:[%s5 + $0x28] sm:$0xff]
  %v479 = vld [vmem:[%s5 + $0x30] sm:$0xff]
  %v480 = vld [vmem:[%s5 + $0x38] sm:$0xff]
  %v481 = vld [vmem:[%s5 + $0x40] sm:$0xff]
  %v482 = vld [vmem:[%s5 + $0x48] sm:$0xff]
  %v483 = vld [vmem:[%s5 + $0x50] sm:$0xff]
  %v484 = vld [vmem:[%s5 + $0x58] sm:$0xff]
  %v485 = vld [vmem:[%s5 + $0x60] sm:$0xff]
  %v486 = vld [vmem:[%s5 + $0x68] sm:$0xff]
  %v487 = vld [vmem:[%s5 + $0x70] sm:$0xff]
  %v488 = vld [vmem:[%s5 + $0x78] sm:$0xff]
  %v489 = vld [vmem:[%s6] sm:$0x1]
  %v491 = vperm.slane %v489, 0
  %493 = vmatpush.msra.mxu0 %v488
  %494 = vmatpush.msra.mxu0 %v487
  %495 = vmatpush.msra.mxu0 %v486
  %496 = vmatpush.msra.mxu0 %v485
  %497 = vmatpush.msra.mxu0 %v484
  %498 = vmatpush.msra.mxu0 %v483
  %499 = vmatpush.msra.mxu0 %v482
  %500 = vmatpush.msra.mxu0 %v481
  %501 = vmatpush.msra.mxu0 %v480
  %502 = vmatpush.msra.mxu0 %v479
  %503 = vmatpush.msra.mxu0 %v478
  %504 = vmatpush.msra.mxu0 %v477
  %505 = vmatpush.msra.mxu0 %v476
  %506 = vmatpush.msra.mxu0 %v475
  %507 = vmatpush.msra.mxu0 %v474
  %508 = vmatpush.msra.mxu0 %v473
  %509 = vmatmul.f32.gmra.mxu0 %v441
  %v510 = vpop.f32.mrf.mxu0
  %v511 = vadd.f32 %v491, %v510
  %512 = vmatmul.f32.gmra.mxu0 %v442
  %v513 = vpop.f32.mrf.mxu0
  %v514 = vadd.f32 %v491, %v513
  %515 = vmatmul.f32.gmra.mxu0 %v443
  %v516 = vpop.f32.mrf.mxu0
  %v517 = vadd.f32 %v491, %v516
  %518 = vmatmul.f32.gmra.mxu0 %v444
  %v519 = vpop.f32.mrf.mxu0
  %v520 = vadd.f32 %v491, %v519
  %521 = vmatmul.f32.gmra.mxu0 %v445
  %v522 = vpop.f32.mrf.mxu0
  %v523 = vadd.f32 %v491, %v522
  %524 = vmatmul.f32.gmra.mxu0 %v446
  %v525 = vpop.f32.mrf.mxu0
  %v526 = vadd.f32 %v491, %v525
  %527 = vmatmul.f32.gmra.mxu0 %v447
  %v528 = vpop.f32.mrf.mxu0
  %v529 = vadd.f32 %v491, %v528
  %530 = vmatmul.f32.gmra.mxu0 %v448
  %v531 = vpop.f32.mrf.mxu0
  %v532 = vadd.f32 %v491, %v531
  %533 = vmatmul.f32.gmra.mxu0 %v449
  %v534 = vpop.f32.mrf.mxu0
  %v535 = vadd.f32 %v491, %v534
  %536 = vmatmul.f32.gmra.mxu0 %v450
  %v537 = vpop.f32.mrf.mxu0
  %v538 = vadd.f32 %v491, %v537
  %539 = vmatmul.f32.gmra.mxu0 %v451
  %v540 = vpop.f32.mrf.mxu0
  %v541 = vadd.f32 %v491, %v540
  %542 = vmatmul.f32.gmra.mxu0 %v452
  %v543 = vpop.f32.mrf.mxu0
  %v544 = vadd.f32 %v491, %v543
  %545 = vmatmul.f32.gmra.mxu0 %v453
  %v546 = vpop.f32.mrf.mxu0
  %v547 = vadd.f32 %v491, %v546
  %548 = vmatmul.f32.gmra.mxu0 %v454
  %v549 = vpop.f32.mrf.mxu0
  %v550 = vadd.f32 %v491, %v549
  %551 = vmatmul.f32.gmra.mxu0 %v455
  %v552 = vpop.f32.mrf.mxu0
  %v553 = vadd.f32 %v491, %v552
  %554 = vmatmul.f32.gmra.mxu0 %v456
  %v555 = vpop.f32.mrf.mxu0
  %v556 = vadd.f32 %v491, %v555
  %557 = vmatmul.f32.gmra.mxu0 %v457
  %v558 = vpop.f32.mrf.mxu0
  %v559 = vadd.f32 %v491, %v558
  %560 = vmatmul.f32.gmra.mxu0 %v458
  %v561 = vpop.f32.mrf.mxu0
  %v562 = vadd.f32 %v491, %v561
  %563 = vmatmul.f32.gmra.mxu0 %v459
  %v564 = vpop.f32.mrf.mxu0
  %v565 = vadd.f32 %v491, %v564
  %566 = vmatmul.f32.gmra.mxu0 %v460
  %v567 = vpop.f32.mrf.mxu0
  %v568 = vadd.f32 %v491, %v567
  %569 = vmatmul.f32.gmra.mxu0 %v461
  %v570 = vpop.f32.mrf.mxu0
  %v571 = vadd.f32 %v491, %v570
  %572 = vmatmul.f32.gmra.mxu0 %v462
  %v573 = vpop.f32.mrf.mxu0
  %v574 = vadd.f32 %v491, %v573
  %575 = vmatmul.f32.gmra.mxu0 %v463
  %v576 = vpop.f32.mrf.mxu0
  %v577 = vadd.f32 %v491, %v576
  %578 = vmatmul.f32.gmra.mxu0 %v464
  %v579 = vpop.f32.mrf.mxu0
  %v580 = vadd.f32 %v491, %v579
  %581 = vmatmul.f32.gmra.mxu0 %v465
  %v582 = vpop.f32.mrf.mxu0
  %v583 = vadd.f32 %v491, %v582
  %584 = vmatmul.f32.gmra.mxu0 %v466
  %v585 = vpop.f32.mrf.mxu0
  %v586 = vadd.f32 %v491, %v585
  %587 = vmatmul.f32.gmra.mxu0 %v467
  %v588 = vpop.f32.mrf.mxu0
  %v589 = vadd.f32 %v491, %v588
  %590 = vmatmul.f32.gmra.mxu0 %v468
  %v591 = vpop.f32.mrf.mxu0
  %v592 = vadd.f32 %v491, %v591
  %593 = vmatmul.f32.gmra.mxu0 %v469
  %v594 = vpop.f32.mrf.mxu0
  %v595 = vadd.f32 %v491, %v594
  %596 = vmatmul.f32.gmra.mxu0 %v470
  %v597 = vpop.f32.mrf.mxu0
  %v598 = vadd.f32 %v491, %v597
  %599 = vmatmul.f32.gmra.mxu0 %v471
  %v600 = vpop.f32.mrf.mxu0
  %v601 = vadd.f32 %v491, %v600
  %602 = vmatmul.f32.gmra.mxu0 %v472
  %v603 = vpop.f32.mrf.mxu0
  %v604 = vadd.f32 %v491, %v603
  %605 = vdwg.mxu0
  %606 = vst [vmem:[%s7] sm:$0xff] %v511
  %607 = vst [vmem:[%s7 + $0x8] sm:$0xff] %v514
  %608 = vst [vmem:[%s7 + $0x10] sm:$0xff] %v517
  %609 = vst [vmem:[%s7 + $0x18] sm:$0xff] %v520
  %610 = vst [vmem:[%s7 + $0x20] sm:$0xff] %v523
  %611 = vst [vmem:[%s7 + $0x28] sm:$0xff] %v526
  %612 = vst [vmem:[%s7 + $0x30] sm:$0xff] %v529
  %613 = vst [vmem:[%s7 + $0x38] sm:$0xff] %v532
  %614 = vst [vmem:[%s7 + $0x40] sm:$0xff] %v535
  %615 = vst [vmem:[%s7 + $0x48] sm:$0xff] %v538
  %616 = vst [vmem:[%s7 + $0x50] sm:$0xff] %v541
  %617 = vst [vmem:[%s7 + $0x58] sm:$0xff] %v544
  %618 = vst [vmem:[%s7 + $0x60] sm:$0xff] %v547
  %619 = vst [vmem:[%s7 + $0x68] sm:$0xff] %v550
  %620 = vst [vmem:[%s7 + $0x70] sm:$0xff] %v553
  %621 = vst [vmem:[%s7 + $0x78] sm:$0xff] %v556
  %622 = vst [vmem:[%s7 + $0x80] sm:$0xff] %v559
  %623 = vst [vmem:[%s7 + $0x88] sm:$0xff] %v562
  %624 = vst [vmem:[%s7 + $0x90] sm:$0xff] %v565
  %625 = vst [vmem:[%s7 + $0x98] sm:$0xff] %v568
  %626 = vst [vmem:[%s7 + $0xa0] sm:$0xff] %v571
  %627 = vst [vmem:[%s7 + $0xa8] sm:$0xff] %v574
  %628 = vst [vmem:[%s7 + $0xb0] sm:$0xff] %v577
  %629 = vst [vmem:[%s7 + $0xb8] sm:$0xff] %v580
  %630 = vst [vmem:[%s7 + $0xc0] sm:$0xff] %v583
  %631 = vst [vmem:[%s7 + $0xc8] sm:$0xff] %v586
  %632 = vst [vmem:[%s7 + $0xd0] sm:$0xff] %v589
  %633 = vst [vmem:[%s7 + $0xd8] sm:$0xff] %v592
  %634 = vst [vmem:[%s7 + $0xe0] sm:$0xff] %v595
  %635 = vst [vmem:[%s7 + $0xe8] sm:$0xff] %v598
  %636 = vst [vmem:[%s7 + $0xf0] sm:$0xff] %v601
  %637 = vst [vmem:[%s7 + $0xf8] sm:$0xff] %v604
  // Predicated region
  $region30: #{dueling_dqn_forward.1} parent=0 // pred_check
    _
  $region31: #{dueling_dqn_forward.1} parent=0 // pred_check_branch
    %639 = sbr.rel (0) target = $region33
  $region32: #{dueling_dqn_forward.1} parent=0 // pred_region
    _
  $region33: #{dueling_dqn_forward.1} parent=0 // pred_fallthru
    _
  // Predicated region
  $region34: #{dueling_dqn_forward.1} parent=0 // pred_check
    _
  $region35: #{dueling_dqn_forward.1} parent=0 // pred_check_branch
    %641 = sbr.rel (0) target = $region37
  $region36: #{dueling_dqn_forward.1} parent=0 // pred_region
    _
  $region37: #{dueling_dqn_forward.1} parent=0 // pred_fallthru
    _

</llo_original>
